<compile_context>
chip_gen: v5e
topology: v5e:2x2
jax: 0.10.0
libtpu: 0.0.40
codegen_flags: <defaults>
</compile_context>

<pallas_src>
import jax
import jax.numpy as jnp
from jax.experimental import pallas as pl
from jax.experimental.pallas import tpu as pltpu

_LANE = 128          # lane-dense slab width (unmasked vst)
_TILE_R_MAX = 1024   # 1024 x 128 x 4B = 512 KiB f32 per block

_THRESHOLD = 20.0    # torch.nn.functional.softplus default threshold


def _parametric_softplus_kernel(beta_ref, x_ref, o_ref):
    # beta_ref: (1,) scalar-prefetch ref in SMEM; x_ref/o_ref: (TILE_R, 128) tiles.
    x = x_ref[...]
    compute_dtype = jnp.float32 if x.dtype != jnp.float64 else x.dtype
    xf = x.astype(compute_dtype)
    beta = beta_ref[0].astype(compute_dtype)
    z = beta * xf
    thr = jnp.asarray(_THRESHOLD, compute_dtype)
    # Clamp the exp argument so the untaken branch never overflows to inf.
    z_safe = jnp.minimum(z, thr)
    soft = jnp.log1p(jnp.exp(z_safe))          # EUP exp + log, VPU select
    out = jnp.where(z > thr, z, soft)
    o_ref[...] = out.astype(o_ref.dtype)


def parametric_softplus(x: jax.Array, beta: jax.Array) -> jax.Array:
    """softplus(beta * x), elementwise, any floating input shape."""
    orig_shape = x.shape
    orig_dtype = x.dtype

    flat = x.reshape(-1)
    n = flat.shape[0]

    # Pad only to a multiple of the lane width (skipped when already aligned).
    n_pad = (-n) % _LANE
    if n_pad:
        flat = jnp.concatenate([flat, jnp.zeros((n_pad,), dtype=orig_dtype)])
    rows = flat.shape[0] // _LANE
    slab = flat.reshape(rows, _LANE)

    # Tile rows: full array if small (full-extent block is always legal),
    # else 1024-row tiles (multiple of 8); ragged last tile handled by Pallas.
    tile_r = rows if rows < _TILE_R_MAX else _TILE_R_MAX
    grid = (pl.cdiv(rows, tile_r),)

    beta_smem = jnp.asarray(beta, dtype=jnp.float32).reshape(1)

    out_slab = pl.pallas_call(
        _parametric_softplus_kernel,
        out_shape=jax.ShapeDtypeStruct((rows, _LANE), orig_dtype),
        grid_spec=pltpu.PrefetchScalarGridSpec(
            num_scalar_prefetch=1,  # beta -> SMEM, one-time load
            grid=grid,
            in_specs=[
                pl.BlockSpec((tile_r, _LANE), lambda i, beta_ref: (i, 0)),
            ],
            out_specs=pl.BlockSpec((tile_r, _LANE), lambda i, beta_ref: (i, 0)),
        ),
        compiler_params=pltpu.CompilerParams(
            dimension_semantics=("parallel",),  # shard tiles across TCs on v7x
        ),
    )(beta_smem, slab)

    if n_pad:
        out = out_slab.reshape(-1)[:n].reshape(orig_shape)
    else:
        out = out_slab.reshape(orig_shape)
    return out


if __name__ == "__main__":
    key = jax.random.PRNGKey(0)
    # NCHW input, small shapes: batch=2, channels=4, spatial=16x16.
    x = jax.random.normal(key, (2, 4, 16, 16), dtype=jnp.float32) * 5.0

    # Deterministic parameter init matching nn.Parameter(torch.ones(1)).
    beta = jnp.ones((1,), dtype=jnp.float32)

    out = parametric_softplus(x, beta)
    out = jax.block_until_ready(out)

    # Reference in plain JAX (same threshold-20 semantics as PyTorch softplus).
    z = beta[0] * x
    ref = jnp.where(z > 20.0, z, jnp.log1p(jnp.exp(jnp.minimum(z, 20.0))))
    assert out.shape == x.shape and out.dtype == x.dtype
    assert jnp.allclose(out, ref, atol=1e-6, rtol=1e-6)

    print("KERNEL_OK")
</pallas_src>

<mosaic_0001>
module attributes {stable_mosaic.version = 11 : i64} {
  func.func @_parametric_softplus_kernel(%arg0: i32, %arg1: memref<1xf32, #tpu.memory_space<smem>>, %arg2: memref<16x128xf32, #tpu.memory_space<vmem>>, %arg3: memref<16x128xf32, #tpu.memory_space<vmem>>) attributes {dimension_semantics = [#tpu.dimension_semantics<parallel>], iteration_bounds = array<i64: 1>, scalar_prefetch = 1 : i64, scratch_operands = 0 : i64, tpu.core_type = #tpu.core_type<tc>, window_params = [{transform_indices = @transform_0, window_bounds = array<i64: 16, 128>}, {transform_indices = @transform_1, window_bounds = array<i64: 16, 128>}]} {
    %c0 = arith.constant 0 : index
    %c0_0 = arith.constant 0 : index
    %0 = vector.load %arg2[%c0, %c0_0] : memref<16x128xf32, #tpu.memory_space<vmem>>, vector<16x128xf32>
    %c0_1 = arith.constant 0 : index
    %1 = memref.load %arg1[%c0_1] : memref<1xf32, #tpu.memory_space<smem>>
    %2 = vector.broadcast %1 : f32 to vector<16x128xf32>
    %3 = arith.mulf %2, %0 : vector<16x128xf32>
    %cst = arith.constant 2.000000e+01 : f32
    %4 = vector.broadcast %cst : f32 to vector<16x128xf32>
    %5 = arith.minimumf %3, %4 : vector<16x128xf32>
    %6 = math.exp %5 : vector<16x128xf32>
    %7 = math.log1p %6 : vector<16x128xf32>
    %cst_2 = arith.constant 2.000000e+01 : f32
    %8 = vector.broadcast %cst_2 : f32 to vector<16x128xf32>
    %9 = arith.cmpf ogt, %3, %8 : vector<16x128xf32>
    %10 = arith.select %9, %3, %7 : vector<16x128xi1>, vector<16x128xf32>
    %c0_3 = arith.constant 0 : index
    %c0_4 = arith.constant 0 : index
    %11 = vector.load %arg3[%c0_3, %c0_4] : memref<16x128xf32, #tpu.memory_space<vmem>>, vector<16x128xf32>
    tpu.vector_store %arg3[%c0_3, %c0_4], %10 {strides = array<i32>} : memref<16x128xf32, #tpu.memory_space<vmem>>, vector<16x128xf32>,
    return
  }
  func.func @transform_0(%arg0: i32, %arg1: memref<1xf32, #tpu.memory_space<smem>>) -> (i32, i32) {
    %c0_i32 = arith.constant 0 : i32
    %c0_i32_0 = arith.constant 0 : i32
    return %arg0, %c0_i32 : i32, i32
  }
  func.func @transform_1(%arg0: i32, %arg1: memref<1xf32, #tpu.memory_space<smem>>) -> (i32, i32) {
    %c0_i32 = arith.constant 0 : i32
    %c0_i32_0 = arith.constant 0 : i32
    return %arg0, %c0_i32 : i32, i32
  }
}

</mosaic_0001>

<llo_original>
// kernel: tpu_custom_call.1
$region0: #{tpu_custom_call.1}
  #allocation0 [shape = 'u32[]', space=smem, size = 0x4, offset = 0x4, fixed_abs, tag = 'smem constant byte address 0x4 - core index']
  #allocation1 [shape = 'u32[72,128]{1,0:T(1,128)}', space=vmem, size = 0x9000, scoped, tag = 'internal scratch']
  #allocation2 [shape = 's32[1]{0}', space=sflag, size = 0x4, scoped, tag = 'scoped memory for tpu_custom_call.1']
  #allocation3 [shape = 'f32[1]{0:T(128)S(6)}', space=smem, size = 0x200, scoped, tag = 'prefetched SMEM operand 0']
  %s0 = inlined_call_operand.<no memory space> [shape: f32[1], index: 0, kind: input, shape index: {}]
  %s1 = inlined_call_operand.hbm [shape: f32[16,128], index: 1, kind: input, shape index: {}]
  %s2 = inlined_call_operand.hbm [shape: f32[16,128], index: 2, kind: output, shape index: {}]
  %s3 = sld [smem:[#allocation0]]
  $region18: #{tpu_custom_call.1} parent=0
    _
  %s5 = ssub.s32 1, %s3
  %s6 = scalar_select 0, %s5, %s3
  %7 = sst [smem:[#allocation3]] %s0
  $region1: #{tpu_custom_call.1} parent=0
    #allocation4 [shape = 'u8[8192]{0}', space=vmem, size = 0x2000, scoped, tag = 'input window, operand 1, single buffered']
    #allocation5 [shape = 's32[1]{0}', space=sflag, size = 0x4, scoped, tag = 'scoped memory for tpu_custom_call.1']
    #allocation6 [shape = 's32[1]{0}', space=sflag, size = 0x4, scoped, tag = 'scoped memory for tpu_custom_call.1']
    #allocation7 [shape = 'u8[8192]{0}', space=vmem, size = 0x2000, scoped, tag = 'output window, operand 0, single buffered']
    %8 = vsyncpa [#allocation5], 0
    %9 = vsyncpa [#allocation6], 0
    // Predicated region
    $region2: #{tpu_custom_call.1} parent=1 // pred_check
      _
    $region3: #{tpu_custom_call.1} parent=1 // pred_check_branch
      %11 = sbr.rel (0) target = $region5
    $region4: #{tpu_custom_call.1} parent=1 // pred_region
      %13 = vsyncadd [#allocation5], 0
      %s14 = sshll.u32 %s1, 4
      %s15 = int_to_ptr.hbm [resolvable:$true] %s14
      %s16 = sshll.u32 [#allocation4], 4
      %s17 = int_to_ptr.vmem [resolvable:$true] %s16
      %22 = dma.hbm_to_vmem [thread:$0]  %s15, 256, %s17, [#allocation5], 128, 128, 8
    $region5: #{tpu_custom_call.1} parent=1 // pred_fallthru
      _
    // Predicated region
    $region6: #{tpu_custom_call.1} parent=1 // pred_check
      _
    $region7: #{tpu_custom_call.1} parent=1 // pred_check_branch
      %24 = sbr.rel (0) target = $region9
    $region8: #{tpu_custom_call.1} parent=1 // pred_region
      %26 = dma.done [#allocation5], 256
    $region9: #{tpu_custom_call.1} parent=1 // pred_fallthru
      _
    %v27 = vld [vmem:[#allocation4] sm:$0xff]
    %v28 = vld [vmem:[#allocation4 + $0x8] sm:$0xff]
    %s29 = sld [smem:[#allocation3]]
    %v30 = vstv %s29
    %v31 = vmul.f32 %v30, %v27
    %v32 = vmul.f32 %v30, %v28
    %v33 = vmin.f32 %v31, 20.0
    %v34 = vmin.f32 %v32, 20.0
    %v35 = vmul.f32 %v33, 1.442695
    %v36 = vpow.pop %v35
    %v37 = vmul.f32 %v34, 1.442695
    %v38 = vpow.pop %v37
    %v39 = vadd.f32 %v36, 1.0
    %v40 = vlog2.pop %v39
    %v41 = vmul.f32 %v40, 0.6931472
    %v42 = vmul.f32 -0.5, %v36
    %v43 = vadd.f32 %v42, 1.0
    %v44 = vmul.f32 %v43, %v36
    %v45 = vand.u32 2147483647, %v36
    %vm46 = vcmp.lt.f32.partialorder %v45, 0.0004427343
    %v47 = vsel %vm46, %v44, %v41
    %v48 = vadd.f32 %v38, 1.0
    %v49 = vlog2.pop %v48
    %v50 = vmul.f32 %v49, 0.6931472
    %v51 = vmul.f32 -0.5, %v38
    %v52 = vadd.f32 %v51, 1.0
    %v53 = vmul.f32 %v52, %v38
    %v54 = vand.u32 2147483647, %v38
    %vm55 = vcmp.lt.f32.partialorder %v54, 0.0004427343
    %v56 = vsel %vm55, %v53, %v50
    %vm57 = vcmp.gt.f32.partialorder %v31, 20.0
    %vm58 = vcmp.gt.f32.partialorder %v32, 20.0
    %v59 = vsel %vm57, %v31, %v47
    %v60 = vsel %vm58, %v32, %v56
    %61 = vst [vmem:[#allocation7] sm:$0xff] %v59
    %62 = vst [vmem:[#allocation7 + $0x8] sm:$0xff] %v60
    // Predicated region
    $region10: #{tpu_custom_call.1} parent=1 // pred_check
      _
    $region11: #{tpu_custom_call.1} parent=1 // pred_check_branch
      %64 = sbr.rel (0) target = $region13
    $region12: #{tpu_custom_call.1} parent=1 // pred_region
      %66 = vsyncadd [#allocation6], 0
      %s67 = sshll.u32 [#allocation7], 4
      %s68 = int_to_ptr.vmem [resolvable:$true] %s67
      %s69 = sshll.u32 %s2, 4
      %s70 = int_to_ptr.hbm [resolvable:$true] %s69
      %75 = dma.vmem_to_hbm [thread:$0]  %s68, 256, %s70, [#allocation6], 128, 128, 8
    $region13: #{tpu_custom_call.1} parent=1 // pred_fallthru
      _
    // Predicated region
    $region14: #{tpu_custom_call.1} parent=1 // pred_check
      _
    $region15: #{tpu_custom_call.1} parent=1 // pred_check_branch
      %77 = sbr.rel (0) target = $region17
    $region16: #{tpu_custom_call.1} parent=1 // pred_region
      %79 = dma.done [#allocation6], 256
    $region17: #{tpu_custom_call.1} parent=1 // pred_fallthru
      _
    %80 = vsyncpa [#allocation5], 1
    %81 = vsyncpa [#allocation6], 1

</llo_original>
